<compile_context>
chip_gen: v5e
topology: v5e:2x2
jax: 0.10.0
libtpu: 0.0.40
codegen_flags: <defaults>
</compile_context>

<pallas_src>
import math

import jax
import jax.numpy as jnp
from jax.experimental import pallas as pl
from jax.experimental.pallas import tpu as pltpu


def _round_up(x, m):
    return (x + m - 1) // m * m


def _lm_head_kernel(x_ref, wd_ref, bd_ref, gamma_ref, beta_ref,
                    e_ref, dbias_ref, out_ref, h_scratch):
    # grid = (row tiles, vocab tiles). Vocab axis is innermost & "arbitrary",
    # so j == 0 runs first for every row tile and h_scratch is valid afterwards.
    j = pl.program_id(1)

    @pl.when(j == 0)
    def _():
        # dense: x [tm, H] · Wd [H_out, H_in] contracted on the "in" dim
        # (equivalent to x @ Wd.T, torch Linear layout), f32 accumulation.
        h = jax.lax.dot_general(
            x_ref[...], wd_ref[...],
            dimension_numbers=(((1,), (1,)), ((), ())),
            preferred_element_type=jnp.float32)
        h = h + bd_ref[...]
        # gelu (erf formulation, matches the torch reference)
        h = h * 0.5 * (1.0 + jax.lax.erf(h * (1.0 / math.sqrt(2.0))))
        # BertLayerNorm (TF style: eps inside the sqrt)
        u = jnp.mean(h, axis=-1, keepdims=True)
        s = jnp.mean((h - u) ** 2, axis=-1, keepdims=True)
        h = (h - u) * jax.lax.rsqrt(s + 1e-5)
        h = gamma_ref[...] * h + beta_ref[...]
        h_scratch[...] = h.astype(h_scratch.dtype)

    # decoder: h [tm, H] · E tile [tn, H] contracted on H -> [tm, tn] logits.
    logits = jax.lax.dot_general(
        h_scratch[...], e_ref[...],
        dimension_numbers=(((1,), (1,)), ((), ())),
        preferred_element_type=jnp.float32)
    out_ref[...] = (logits + dbias_ref[...]).astype(out_ref.dtype)


def bert_lm_prediction_head(hidden_states, params, *, tm=512, tn=512,
                            compute_dtype=jnp.bfloat16,
                            out_dtype=jnp.float32):
    """hidden_states: [B, S, H]. Returns logits [B, S, V] in out_dtype."""
    B, S, H = hidden_states.shape
    Wd = params["dense_w"]          # [H, H]  (torch Linear weight, out x in)
    bd = params["dense_b"]          # [H]
    gamma = params["ln_w"]          # [H]
    beta = params["ln_b"]           # [H]
    E = params["embedding_w"]       # [V, H]
    dec_bias = params["decoder_b"]  # [V]
    V = E.shape[0]

    N = B * S

    # Bound tiles by a VMEM budget, clamp to (padded) problem size, and pad
    # N / V to exact tile multiples so nothing is silently dropped.
    tm = min(tm, _round_up(N, 8))
    tn = min(tn, _round_up(V, 128))
    Np = _round_up(N, tm)
    Vp = _round_up(V, tn)

    x2d = hidden_states.reshape(N, H).astype(compute_dtype)
    if Np != N:
        x2d = jnp.pad(x2d, ((0, Np - N), (0, 0)))

    E_c = E.astype(compute_dtype)
    dbias = dec_bias.astype(jnp.float32)
    if Vp != V:
        E_c = jnp.pad(E_c, ((0, Vp - V), (0, 0)))
        dbias = jnp.pad(dbias, ((0, Vp - V),))

    grid = (Np // tm, Vp // tn)

    out2d = pl.pallas_call(
        _lm_head_kernel,
        out_shape=jax.ShapeDtypeStruct((Np, Vp), out_dtype),
        grid_spec=pltpu.PrefetchScalarGridSpec(
            num_scalar_prefetch=0,
            grid=grid,
            in_specs=[
                pl.BlockSpec((tm, H), lambda i, j: (i, 0)),   # x row tile
                pl.BlockSpec((H, H), lambda i, j: (0, 0)),    # Wd [out, in]
                pl.BlockSpec((1, H), lambda i, j: (0, 0)),    # dense bias
                pl.BlockSpec((1, H), lambda i, j: (0, 0)),    # LN gamma
                pl.BlockSpec((1, H), lambda i, j: (0, 0)),    # LN beta
                pl.BlockSpec((tn, H), lambda i, j: (j, 0)),   # E row tile [V, H]
                pl.BlockSpec((1, tn), lambda i, j: (0, j)),   # decoder bias tile
            ],
            out_specs=pl.BlockSpec((tm, tn), lambda i, j: (i, j)),
            scratch_shapes=[pltpu.VMEM((tm, H), compute_dtype)],
        ),
        compiler_params=pltpu.CompilerParams(
            dimension_semantics=("parallel", "arbitrary"),
            vmem_limit_bytes=48 * 1024 * 1024),
    )(
        x2d,
        Wd.astype(compute_dtype),
        bd.reshape(1, H).astype(jnp.float32),
        gamma.reshape(1, H).astype(jnp.float32),
        beta.reshape(1, H).astype(jnp.float32),
        E_c,
        dbias.reshape(1, Vp),
    )
    return out2d[:N, :V].reshape(B, S, V)


def _reference(hidden_states, params):
    x = hidden_states.astype(jnp.float32)
    h = x @ params["dense_w"].T + params["dense_b"]
    h = h * 0.5 * (1.0 + jax.lax.erf(h / math.sqrt(2.0)))
    u = jnp.mean(h, axis=-1, keepdims=True)
    s = jnp.mean((h - u) ** 2, axis=-1, keepdims=True)
    h = (h - u) / jnp.sqrt(s + 1e-5)
    h = params["ln_w"] * h + params["ln_b"]
    return h @ params["embedding_w"].T + params["decoder_b"]


if __name__ == "__main__":
    key = jax.random.PRNGKey(0)

    # --- case 1: small, tile-aligned shapes --------------------------------
    B, S, H, V = 2, 8, 32, 256
    k_x, k_wd, k_bd, k_e, k_db = jax.random.split(key, 5)
    hidden_states = jax.random.normal(k_x, (B, S, H), dtype=jnp.float32)
    params = {
        "dense_w": jax.random.normal(k_wd, (H, H), dtype=jnp.float32) * 0.05,
        "dense_b": jax.random.normal(k_bd, (H,), dtype=jnp.float32) * 0.05,
        "ln_w": jnp.ones((H,), dtype=jnp.float32),
        "ln_b": jnp.zeros((H,), dtype=jnp.float32),
        "embedding_w": jax.random.normal(k_e, (V, H), dtype=jnp.float32) * 0.05,
        "decoder_b": jax.random.normal(k_db, (V,), dtype=jnp.float32) * 0.05,
    }
    ref = _reference(hidden_states, params)

    # bf16 matmul path (production default): loose tolerance.
    out_bf16 = jax.block_until_ready(bert_lm_prediction_head(hidden_states, params))
    assert out_bf16.shape == (B, S, V)
    assert jnp.allclose(out_bf16, ref, atol=5e-2, rtol=5e-2), "bf16 path mismatch"

    # f32 matmul path: tight tolerance (exact semantics check).
    out_f32 = jax.block_until_ready(
        bert_lm_prediction_head(hidden_states, params,
                                compute_dtype=jnp.float32))
    assert jnp.allclose(out_f32, ref, atol=1e-4, rtol=1e-4), "f32 path mismatch"

    # --- case 2: ragged shapes exercising the N/V padding path --------------
    B2, S2, V2 = 2, 5, 200
    k_x2, k_e2 = jax.random.split(k_x, 2)
    hs2 = jax.random.normal(k_x2, (B2, S2, H), dtype=jnp.float32)
    params2 = dict(params)
    params2["embedding_w"] = jax.random.normal(k_e2, (V2, H), dtype=jnp.float32) * 0.05
    params2["decoder_b"] = jnp.zeros((V2,), dtype=jnp.float32)
    out2 = jax.block_until_ready(
        bert_lm_prediction_head(hs2, params2, compute_dtype=jnp.float32))
    ref2 = _reference(hs2, params2)
    assert out2.shape == (B2, S2, V2)
    assert jnp.allclose(out2, ref2, atol=1e-4, rtol=1e-4), "padded path mismatch"

    print("KERNEL_OK")
</pallas_src>

<mosaic_0001>
module attributes {stable_mosaic.version = 11 : i64} {
  func.func @_lm_head_kernel(%arg0: i32, %arg1: i32, %arg2: memref<16x32xbf16, #tpu.memory_space<vmem>>, %arg3: memref<32x32xbf16, #tpu.memory_space<vmem>>, %arg4: memref<1x32xf32, #tpu.memory_space<vmem>>, %arg5: memref<1x32xf32, #tpu.memory_space<vmem>>, %arg6: memref<1x32xf32, #tpu.memory_space<vmem>>, %arg7: memref<256x32xbf16, #tpu.memory_space<vmem>>, %arg8: memref<1x256xf32, #tpu.memory_space<vmem>>, %arg9: memref<16x256xf32, #tpu.memory_space<vmem>>, %arg10: memref<16x32xbf16, #tpu.memory_space<vmem>>) attributes {dimension_semantics = [#tpu.dimension_semantics<parallel>, #tpu.dimension_semantics<arbitrary>], iteration_bounds = array<i64: 1, 1>, scalar_prefetch = 0 : i64, scratch_operands = 1 : i64, tpu.core_type = #tpu.core_type<tc>, window_params = [{transform_indices = @transform_0, window_bounds = array<i64: 16, 32>}, {pipeline_mode = #tpu.pipeline_mode<synchronous>, transform_indices = @transform_1, window_bounds = array<i64: 32, 32>}, {pipeline_mode = #tpu.pipeline_mode<synchronous>, transform_indices = @transform_2, window_bounds = array<i64: 1, 32>}, {pipeline_mode = #tpu.pipeline_mode<synchronous>, transform_indices = @transform_3, window_bounds = array<i64: 1, 32>}, {pipeline_mode = #tpu.pipeline_mode<synchronous>, transform_indices = @transform_4, window_bounds = array<i64: 1, 32>}, {transform_indices = @transform_5, window_bounds = array<i64: 256, 32>}, {transform_indices = @transform_6, window_bounds = array<i64: 1, 256>}, {transform_indices = @transform_7, window_bounds = array<i64: 16, 256>}]} {
    %c0_i32 = arith.constant 0 : i32
    %0 = arith.cmpi eq, %arg1, %c0_i32 : i32
    %1 = arith.extui %0 : i1 to i32
    %c0_i32_0 = arith.constant 0 : i32
    %2 = arith.cmpi ne, %1, %c0_i32_0 : i32
    scf.if %2 {
      %c0_8 = arith.constant 0 : index
      %c0_9 = arith.constant 0 : index
      %10 = vector.load %arg2[%c0_8, %c0_9] : memref<16x32xbf16, #tpu.memory_space<vmem>>, vector<16x32xbf16>
      %c0_10 = arith.constant 0 : index
      %c0_11 = arith.constant 0 : index
      %11 = vector.load %arg3[%c0_10, %c0_11] : memref<32x32xbf16, #tpu.memory_space<vmem>>, vector<32x32xbf16>
      %cst_12 = arith.constant dense<0.000000e+00> : vector<16x32xf32>
      %12 = tpu.matmul %10, %11, %cst_12 {dimension_numbers = #tpu.dot_dimension_numbers<[1], [1], [0], [0], [0, 0, 1, 0], [], []>} : vector<16x32xbf16>, vector<32x32xbf16>, vector<16x32xf32> -> vector<16x32xf32>
      %c0_13 = arith.constant 0 : index
      %c0_14 = arith.constant 0 : index
      %13 = vector.load %arg4[%c0_13, %c0_14] : memref<1x32xf32, #tpu.memory_space<vmem>>, vector<1x32xf32>
      %14 = vector.broadcast %13 : vector<1x32xf32> to vector<16x32xf32>
      %15 = arith.addf %12, %14 : vector<16x32xf32>
      %cst_15 = arith.constant 5.000000e-01 : f32
      %16 = vector.broadcast %cst_15 : f32 to vector<16x32xf32>
      %17 = arith.mulf %15, %16 : vector<16x32xf32>
      %cst_16 = arith.constant 0.707106769 : f32
      %18 = vector.broadcast %cst_16 : f32 to vector<16x32xf32>
      %19 = arith.mulf %15, %18 : vector<16x32xf32>
      %20 = math.erf %19 : vector<16x32xf32>
      %cst_17 = arith.constant 1.000000e+00 : f32
      %21 = vector.broadcast %cst_17 : f32 to vector<16x32xf32>
      %22 = arith.addf %21, %20 : vector<16x32xf32>
      %23 = arith.mulf %17, %22 : vector<16x32xf32>
      %cst_18 = arith.constant dense<0.000000e+00> : vector<16xf32>
      %24 = vector.multi_reduction <add>, %23, %cst_18 [1] : vector<16x32xf32> to vector<16xf32>
      %25 = vector.shape_cast %24 : vector<16xf32> to vector<16x1xf32>
      %cst_19 = arith.constant 3.200000e+01 : f32
      %26 = vector.broadcast %cst_19 : f32 to vector<16x1xf32>
      %27 = arith.divf %25, %26 : vector<16x1xf32>
      %28 = vector.broadcast %27 : vector<16x1xf32> to vector<16x32xf32>
      %29 = arith.subf %23, %28 : vector<16x32xf32>
      %30 = arith.mulf %29, %29 : vector<16x32xf32>
      %cst_20 = arith.constant dense<0.000000e+00> : vector<16xf32>
      %31 = vector.multi_reduction <add>, %30, %cst_20 [1] : vector<16x32xf32> to vector<16xf32>
      %32 = vector.shape_cast %31 : vector<16xf32> to vector<16x1xf32>
      %cst_21 = arith.constant 3.200000e+01 : f32
      %33 = vector.broadcast %cst_21 : f32 to vector<16x1xf32>
      %34 = arith.divf %32, %33 : vector<16x1xf32>
      %35 = vector.broadcast %27 : vector<16x1xf32> to vector<16x32xf32>
      %36 = arith.subf %23, %35 : vector<16x32xf32>
      %cst_22 = arith.constant 9.99999974E-6 : f32
      %37 = vector.broadcast %cst_22 : f32 to vector<16x1xf32>
      %38 = arith.addf %34, %37 : vector<16x1xf32>
      %39 = math.rsqrt %38 : vector<16x1xf32>
      %40 = vector.broadcast %39 : vector<16x1xf32> to vector<16x32xf32>
      %41 = arith.mulf %36, %40 : vector<16x32xf32>
      %c0_23 = arith.constant 0 : index
      %c0_24 = arith.constant 0 : index
      %42 = vector.load %arg5[%c0_23, %c0_24] : memref<1x32xf32, #tpu.memory_space<vmem>>, vector<1x32xf32>
      %43 = vector.broadcast %42 : vector<1x32xf32> to vector<16x32xf32>
      %44 = arith.mulf %43, %41 : vector<16x32xf32>
      %c0_25 = arith.constant 0 : index
      %c0_26 = arith.constant 0 : index
      %45 = vector.load %arg6[%c0_25, %c0_26] : memref<1x32xf32, #tpu.memory_space<vmem>>, vector<1x32xf32>
      %46 = vector.broadcast %45 : vector<1x32xf32> to vector<16x32xf32>
      %47 = arith.addf %44, %46 : vector<16x32xf32>
      %48 = arith.truncf %47 : vector<16x32xf32> to vector<16x32xbf16>
      %c0_27 = arith.constant 0 : index
      %c0_28 = arith.constant 0 : index
      %49 = vector.load %arg10[%c0_27, %c0_28] : memref<16x32xbf16, #tpu.memory_space<vmem>>, vector<16x32xbf16>
      tpu.vector_store %arg10[%c0_27, %c0_28], %48 {strides = array<i32>} : memref<16x32xbf16, #tpu.memory_space<vmem>>, vector<16x32xbf16>,
    } else {
    }
    %c0 = arith.constant 0 : index
    %c0_1 = arith.constant 0 : index
    %3 = vector.load %arg10[%c0, %c0_1] : memref<16x32xbf16, #tpu.memory_space<vmem>>, vector<16x32xbf16>
    %c0_2 = arith.constant 0 : index
    %c0_3 = arith.constant 0 : index
    %4 = vector.load %arg7[%c0_2, %c0_3] : memref<256x32xbf16, #tpu.memory_space<vmem>>, vector<256x32xbf16>
    %cst = arith.constant dense<0.000000e+00> : vector<16x256xf32>
    %5 = tpu.matmul %3, %4, %cst {dimension_numbers = #tpu.dot_dimension_numbers<[1], [1], [0], [0], [0, 0, 1, 0], [], []>} : vector<16x32xbf16>, vector<256x32xbf16>, vector<16x256xf32> -> vector<16x256xf32>
    %c0_4 = arith.constant 0 : index
    %c0_5 = arith.constant 0 : index
    %6 = vector.load %arg8[%c0_4, %c0_5] : memref<1x256xf32, #tpu.memory_space<vmem>>, vector<1x256xf32>
    %7 = vector.broadcast %6 : vector<1x256xf32> to vector<16x256xf32>
    %8 = arith.addf %5, %7 : vector<16x256xf32>
    %c0_6 = arith.constant 0 : index
    %c0_7 = arith.constant 0 : index
    %9 = vector.load %arg9[%c0_6, %c0_7] : memref<16x256xf32, #tpu.memory_space<vmem>>, vector<16x256xf32>
    tpu.vector_store %arg9[%c0_6, %c0_7], %8 {strides = array<i32>} : memref<16x256xf32, #tpu.memory_space<vmem>>, vector<16x256xf32>,
    return
  }
  func.func @transform_0(%arg0: i32, %arg1: i32) -> (i32, i32) {
    %c0_i32 = arith.constant 0 : i32
    %c0_i32_0 = arith.constant 0 : i32
    return %arg0, %c0_i32 : i32, i32
  }
  func.func @transform_1(%arg0: i32, %arg1: i32) -> (i32, i32) {
    %c0_i32 = arith.constant 0 : i32
    %c0_i32_0 = arith.constant 0 : i32
    %c0_i32_1 = arith.constant 0 : i32
    return %c0_i32, %c0_i32_0 : i32, i32
  }
  func.func @transform_2(%arg0: i32, %arg1: i32) -> (i32, i32) {
    %c0_i32 = arith.constant 0 : i32
    %c0_i32_0 = arith.constant 0 : i32
    %c0_i32_1 = arith.constant 0 : i32
    return %c0_i32, %c0_i32_0 : i32, i32
  }
  func.func @transform_3(%arg0: i32, %arg1: i32) -> (i32, i32) {
    %c0_i32 = arith.constant 0 : i32
    %c0_i32_0 = arith.constant 0 : i32
    %c0_i32_1 = arith.constant 0 : i32
    return %c0_i32, %c0_i32_0 : i32, i32
  }
  func.func @transform_4(%arg0: i32, %arg1: i32) -> (i32, i32) {
    %c0_i32 = arith.constant 0 : i32
    %c0_i32_0 = arith.constant 0 : i32
    %c0_i32_1 = arith.constant 0 : i32
    return %c0_i32, %c0_i32_0 : i32, i32
  }
  func.func @transform_5(%arg0: i32, %arg1: i32) -> (i32, i32) {
    %c0_i32 = arith.constant 0 : i32
    %c0_i32_0 = arith.constant 0 : i32
    return %arg1, %c0_i32 : i32, i32
  }
  func.func @transform_6(%arg0: i32, %arg1: i32) -> (i32, i32) {
    %c0_i32 = arith.constant 0 : i32
    %c0_i32_0 = arith.constant 0 : i32
    return %c0_i32, %arg1 : i32, i32
  }
  func.func @transform_7(%arg0: i32, %arg1: i32) -> (i32, i32) {
    %c0_i32 = arith.constant 0 : i32
    return %arg0, %arg1 : i32, i32
  }
}

</mosaic_0001>

<llo_original>
// kernel: tpu_custom_call.1
$region0: #{tpu_custom_call.1}
  #allocation0 [shape = 'u32[]', space=smem, size = 0x4, offset = 0x4, fixed_abs, tag = 'smem constant byte address 0x4 - core index']
  #allocation1 [shape = 'u32[72,128]{1,0:T(1,128)}', space=vmem, size = 0x9000, scoped, tag = 'internal scratch']
  #allocation2 [shape = 'bf16[16,32]{1,0:T(8,128)(2,1)}', space=vmem, size = 0x1000, scoped, tag = 'scratch operand']
  %s0 = inlined_call_operand.vmem [shape: bf16[16,32], index: 0, kind: input, shape index: {}]
  %s1 = inlined_call_operand.vmem [shape: bf16[32,32], index: 1, kind: input, shape index: {}]
  %s2 = inlined_call_operand.vmem [shape: f32[1,32], index: 2, kind: input, shape index: {}]
  %s3 = inlined_call_operand.vmem [shape: f32[1,32], index: 3, kind: input, shape index: {}]
  %s4 = inlined_call_operand.vmem [shape: f32[1,32], index: 4, kind: input, shape index: {}]
  %s5 = inlined_call_operand.vmem [shape: bf16[256,32], index: 5, kind: input, shape index: {}]
  %s6 = inlined_call_operand.vmem [shape: f32[1,256], index: 6, kind: input, shape index: {}]
  %s7 = inlined_call_operand.hbm [shape: f32[16,256], index: 7, kind: output, shape index: {}]
  %s8 = sld [smem:[#allocation0]]
  $region42: #{tpu_custom_call.1} parent=0
    _
  %s10 = ssub.s32 1, %s8
  %s11 = scalar_select 0, %s10, %s8
  $region1: #{tpu_custom_call.1} parent=0
    #allocation3 [shape = 'u8[16384]{0}', space=vmem, size = 0x4000, scoped, tag = 'output window, operand 0, single buffered']
    #allocation4 [shape = 's32[1]{0}', space=sflag, size = 0x4, scoped, tag = 'scoped memory for tpu_custom_call.1']
    %12 = vsyncpa [#allocation4], 0
    // Predicated region
    $region2: #{tpu_custom_call.1} parent=1 // pred_check
      _
    $region3: #{tpu_custom_call.1} parent=1 // pred_check_branch
      %14 = sbr.rel (0) target = $region5
    $region4: #{tpu_custom_call.1} parent=1 // pred_region
      _
    $region5: #{tpu_custom_call.1} parent=1 // pred_fallthru
      _
    // Predicated region
    $region6: #{tpu_custom_call.1} parent=1 // pred_check
      _
    $region7: #{tpu_custom_call.1} parent=1 // pred_check_branch
      %16 = sbr.rel (0) target = $region9
    $region8: #{tpu_custom_call.1} parent=1 // pred_region
      _
    $region9: #{tpu_custom_call.1} parent=1 // pred_fallthru
      _
    // Predicated region
    $region10: #{tpu_custom_call.1} parent=1 // pred_check
      _
    $region11: #{tpu_custom_call.1} parent=1 // pred_check_branch
      %18 = sbr.rel (0) target = $region13
    $region12: #{tpu_custom_call.1} parent=1 // pred_region
      _
    $region13: #{tpu_custom_call.1} parent=1 // pred_fallthru
      _
    // Predicated region
    $region14: #{tpu_custom_call.1} parent=1 // pred_check
      _
    $region15: #{tpu_custom_call.1} parent=1 // pred_check_branch
      %20 = sbr.rel (0) target = $region17
    $region16: #{tpu_custom_call.1} parent=1 // pred_region
      _
    $region17: #{tpu_custom_call.1} parent=1 // pred_fallthru
      _
    // Predicated region
    $region18: #{tpu_custom_call.1} parent=1 // pred_check
      _
    $region19: #{tpu_custom_call.1} parent=1 // pred_check_branch
      %22 = sbr.rel (0) target = $region21
    $region20: #{tpu_custom_call.1} parent=1 // pred_region
      _
    $region21: #{tpu_custom_call.1} parent=1 // pred_fallthru
      _
    // Predicated region
    $region22: #{tpu_custom_call.1} parent=1 // pred_check
      _
    $region23: #{tpu_custom_call.1} parent=1 // pred_check_branch
      %24 = sbr.rel (0) target = $region25
    $region24: #{tpu_custom_call.1} parent=1 // pred_region
      _
    $region25: #{tpu_custom_call.1} parent=1 // pred_fallthru
      _
    // Predicated region
    $region26: #{tpu_custom_call.1} parent=1 // pred_check
      _
    $region27: #{tpu_custom_call.1} parent=1 // pred_check_branch
      %26 = sbr.rel (0) target = $region29
    $region28: #{tpu_custom_call.1} parent=1 // pred_region
      _
    $region29: #{tpu_custom_call.1} parent=1 // pred_fallthru
      _
    %p28 = scmp.eq.s32.totalorder 0, 0
    // Predicated region
    $region30: #{tpu_custom_call.1} parent=1 // pred_check
      %p29 = pneg %p28
    $region31: #{tpu_custom_call.1} parent=1 // pred_check_branch
      %31 = sbr.rel (%p29) target = $region33
    $region32: #{tpu_custom_call.1} parent=1 // pred_region
      %v32 = vld [vmem:[%s0] sm:$0xf]
      %v33 = vld [vmem:[%s0 + $0x4] sm:$0xf]
      %v34 = vld [vmem:[%s1] sm:$0xf]
      %v35 = vld [vmem:[%s1 + $0x4] sm:$0xf]
      %v36 = vld [vmem:[%s1 + $0x8] sm:$0xf]
      %v37 = vld [vmem:[%s1 + $0xc] sm:$0xf]
      %v38 = vld [vmem:[%s2] sm:$0x1]
      %v40 = vperm.slane %v38, 0
      %v44 = vunpack.c.l.b16 %v32
      %v45 = vunpack.c.l.b16 %v33
      %v46 = vpack.c.b16 %v45, %v44
      %v51 = vunpack.c.l.b16 %v34
      %v52 = vunpack.c.l.b16 %v35
      %v53 = vunpack.c.l.b16 %v36
      %v54 = vunpack.c.l.b16 %v37
      %v55 = vpack.c.b16 %v52, %v51
      %v56 = vpack.c.b16 %v54, %v53
      %vm57 = vcmask 261120
      %v59 = vsel %vm57, %v46, 0
      %v62 = vsel %vm57, %v55, 0
      %v65 = vsel %vm57, %v56, 0
      %67 = vmatpush.bf16.xpose.msra.mxu0 0
      %68 = vmatpush.bf16.xpose.msra.mxu0 0
      %69 = vmatpush.bf16.xpose.msra.mxu0 0
      %70 = vmatpush.bf16.xpose.msra.mxu0 0
      %71 = vmatpush.bf16.xpose.msra.mxu0 0
      %72 = vmatpush.bf16.xpose.msra.mxu0 0
      %73 = vmatpush.bf16.xpose.msra.mxu0 %v65
      %74 = vmatpush.bf16.xpose.msra.mxu0 %v62
      %75 = vmatmul.bf16.gmra.mxu0 %v59
      %v76 = vpop.f32.mrf.mxu0
      %v77 = vadd.f32 %v40, %v76
      %v78 = vpop.f32.mrf.mxu0
      %v79 = vadd.f32 %v40, %v78
      %80 = vdwg.mxu0
      %v81 = vmul.f32 %v77, 0.5
      %v82 = vmul.f32 %v79, 0.5
      %v83 = vmul.f32 %v77, 0.70710677
      %v84 = vmul.f32 %v79, 0.70710677
      %v85 = vmul.f32 %v83, %v83
      %v86 = vmin.f32 16.0, %v85
      %v87 = vmul.f32 %v86, 2.1237322e-06
      %v88 = vadd.f32 %v87, 0.00028619796
      %v89 = vmul.f32 %v86, %v88
      %v90 = vadd.f32 %v89, 0.0036580483
      %v91 = vmul.f32 %v86, %v90
      %v92 = vadd.f32 %v91, 0.05243302
      %v93 = vmul.f32 %v86, %v92
      %v94 = vadd.f32 %v93, 0.18741608
      %v95 = vmul.f32 %v86, %v94
      %v96 = vadd.f32 %v95, 1.1283791
      %v97 = vmul.f32 %v83, %v96
      %v98 = vmul.f32 %v86, 3.8918573e-05
      %v99 = vadd.f32 %v98, 0.001143296
      %v100 = vmul.f32 %v86, %v99
      %v101 = vadd.f32 %v100, 0.014752088
      %v102 = vmul.f32 %v86, %v101
      %v103 = vadd.f32 %v102, 0.112945676
      %v104 = vmul.f32 %v86, %v103
      %v105 = vadd.f32 %v104, 0.4994258
      %v106 = vmul.f32 %v86, %v105
      %v107 = vadd.f32 %v106, 1.0
      %v108 = vrcp.pop %v107
      %v109 = vmul.f32 %v107, %v108
      %v110 = vsub.f32 1.0, %v109
      %v111 = vmul.f32 %v108, %v110
      %v112 = vadd.f32 %v108, %v111
      %vm113 = vweird.f32 %v107
      %vm114 = vweird.f32 %v108
      %vm115 = vmor %vm113, %vm114
      %v116 = vsel %vm115, %v108, %v112
      %v117 = vand.u32 2147483647, %v107
      %vm118 = vcmp.eq.f32.partialorder %v117, 8.507059e+37
      %v119 = vand.u32 %v107, 2147483648
      %v120 = vor.u32 1.1754944e-38, %v119
      %v121 = vsel %vm118, %v120, %v116
      %v122 = vmul.f32 %v97, %v121
      %v123 = vmin.f32 %v122, 1.0
      %v124 = vmax.f32 %v123, -1.0
      %v125 = vmul.f32 %v84, %v84
      %v126 = vmin.f32 16.0, %v125
      %v127 = vmul.f32 %v126, 2.1237322e-06
      %v128 = vadd.f32 %v127, 0.00028619796
      %v129 = vmul.f32 %v126, %v128
      %v130 = vadd.f32 %v129, 0.0036580483
      %v131 = vmul.f32 %v126, %v130
      %v132 = vadd.f32 %v131, 0.05243302
      %v133 = vmul.f32 %v126, %v132
      %v134 = vadd.f32 %v133, 0.18741608
      %v135 = vmul.f32 %v126, %v134
      %v136 = vadd.f32 %v135, 1.1283791
      %v137 = vmul.f32 %v84, %v136
      %v138 = vmul.f32 %v126, 3.8918573e-05
      %v139 = vadd.f32 %v138, 0.001143296
      %v140 = vmul.f32 %v126, %v139
      %v141 = vadd.f32 %v140, 0.014752088
      %v142 = vmul.f32 %v126, %v141
      %v143 = vadd.f32 %v142, 0.112945676
      %v144 = vmul.f32 %v126, %v143
      %v145 = vadd.f32 %v144, 0.4994258
      %v146 = vmul.f32 %v126, %v145
      %v147 = vadd.f32 %v146, 1.0
      %v148 = vrcp.pop %v147
      %v149 = vmul.f32 %v147, %v148
      %v150 = vsub.f32 1.0, %v149
      %v151 = vmul.f32 %v148, %v150
      %v152 = vadd.f32 %v148, %v151
      %vm153 = vweird.f32 %v147
      %vm154 = vweird.f32 %v148
      %vm155 = vmor %vm153, %vm154
      %v156 = vsel %vm155, %v148, %v152
      %v157 = vand.u32 2147483647, %v147
      %vm158 = vcmp.eq.f32.partialorder %v157, 8.507059e+37
      %v159 = vand.u32 %v147, 2147483648
      %v160 = vor.u32 1.1754944e-38, %v159
      %v161 = vsel %vm158, %v160, %v156
      %v162 = vmul.f32 %v137, %v161
      %v163 = vmin.f32 %v162, 1.0
      %v164 = vmax.f32 %v163, -1.0
      %v165 = vadd.f32 %v124, 1.0
      %v166 = vadd.f32 %v164, 1.0
      %v167 = vmul.f32 %v81, %v165
      %v168 = vmul.f32 %v82, %v166
      %v169 = vsel %vm57, %v167, 0.0
      %170 = vadd.xlane.f32.xlu0 %v169
      %v171 = vpop.xlane.xlu0 %170
      %v172 = vsel %vm57, %v168, 0.0
      %173 = vadd.xlane.f32.xlu0 %v172
      %v174 = vpop.xlane.xlu0 %173
      %v175 = vrcp.pop 32.0
      %v176 = vmul.f32 32.0, %v175
      %v177 = vsub.f32 1.0, %v176
      %v178 = vmul.f32 %v175, %v177
      %v179 = vadd.f32 %v175, %v178
      %vm180 = vweird.f32 %v175
      %v181 = vsel %vm180, %v175, %v179
      %v182 = vmul.f32 %v171, %v181
      %v183 = vmul.f32 %v174, %v181
      %v184 = vsub.f32 %v167, %v182
      %v185 = vsub.f32 %v168, %v183
      %v186 = vmul.f32 %v184, %v184
      %v187 = vmul.f32 %v185, %v185
      %v188 = vsel %vm57, %v186, 0.0
      %189 = vadd.xlane.f32.xlu0 %v188
      %v190 = vpop.xlane.xlu0 %189
      %v191 = vsel %vm57, %v187, 0.0
      %192 = vadd.xlane.f32.xlu0 %v191
      %v193 = vpop.xlane.xlu0 %192
      %v194 = vmul.f32 %v190, %v181
      %v195 = vmul.f32 %v193, %v181
      %v196 = vadd.f32 %v194, 1e-05
      %v197 = vadd.f32 %v195, 1e-05
      %v198 = vrsqrt.pop %v196
      %v199 = vmul.f32 %v198, %v196
      %v200 = vmul.f32 %v199, %v198
      %v201 = vmul.f32 0.5, %v200
      %v202 = vsub.f32 1.5, %v201
      %v203 = vmul.f32 %v198, %v202
      %vm204 = vweird.f32 %v196
      %vm205 = vweird.f32 %v198
      %vm206 = vmor %vm204, %vm205
      %v207 = vsel %vm206, %v198, %v203
      %v208 = vrsqrt.pop %v197
      %v209 = vmul.f32 %v208, %v197
      %v210 = vmul.f32 %v209, %v208
      %v211 = vmul.f32 0.5, %v210
      %v212 = vsub.f32 1.5, %v211
      %v213 = vmul.f32 %v208, %v212
      %vm214 = vweird.f32 %v197
      %vm215 = vweird.f32 %v208
      %vm216 = vmor %vm214, %vm215
      %v217 = vsel %vm216, %v208, %v213
      %v218 = vmul.f32 %v184, %v207
      %v219 = vmul.f32 %v185, %v217
      %v220 = vld [vmem:[%s3] sm:$0x1]
      %v222 = vperm.slane %v220, 0
      %v224 = vmul.f32 %v222, %v218
      %v225 = vmul.f32 %v222, %v219
      %v226 = vld [vmem:[%s4] sm:$0x1]
      %v228 = vperm.slane %v226, 0
      %v230 = vadd.f32 %v224, %v228
      %v231 = vadd.f32 %v225, %v228
      %v232 = vpack.c.bf16 %v230, %v230
      %v233 = vpack.c.bf16 %v231, %v231
      %vm234 = vcmask 257024
      %235 = vst.msk [vmem:[#allocation2] sm:$0xf] %vm234, %v232
      %236 = vst.msk [vmem:[#allocation2 + $0x4] sm:$0xf] %vm234, %v233
    $region33: #{tpu_custom_call.1} parent=1 // pred_fallthru
      _
    %v237 = vld [vmem:[#allocation2] sm:$0xf]
    %v238 = vld [vmem:[#allocation2 + $0x4] sm:$0xf]
    %v239 = vld [vmem:[%s5] sm:$0xf]
    %v240 = vld [vmem:[%s5 + $0x4] sm:$0xf]
    %v241 = vld [vmem:[%s5 + $0x8] sm:$0xf]
    %v242 = vld [vmem:[%s5 + $0xc] sm:$0xf]
    %v243 = vld [vmem:[%s5 + $0x10] sm:$0xf]
    %v244 = vld [vmem:[%s5 + $0x14] sm:$0xf]
    %v245 = vld [vmem:[%s5 + $0x18] sm:$0xf]
    %v246 = vld [vmem:[%s5 + $0x1c] sm:$0xf]
    %v247 = vld [vmem:[%s5 + $0x20] sm:$0xf]
    %v248 = vld [vmem:[%s5 + $0x24] sm:$0xf]
    %v249 = vld [vmem:[%s5 + $0x28] sm:$0xf]
    %v250 = vld [vmem:[%s5 + $0x2c] sm:$0xf]
    %v251 = vld [vmem:[%s5 + $0x30] sm:$0xf]
    %v252 = vld [vmem:[%s5 + $0x34] sm:$0xf]
    %v253 = vld [vmem:[%s5 + $0x38] sm:$0xf]
    %v254 = vld [vmem:[%s5 + $0x3c] sm:$0xf]
    %v255 = vld [vmem:[%s5 + $0x40] sm:$0xf]
    %v256 = vld [vmem:[%s5 + $0x44] sm:$0xf]
    %v257 = vld [vmem:[%s5 + $0x48] sm:$0xf]
    %v258 = vld [vmem:[%s5 + $0x4c] sm:$0xf]
    %v259 = vld [vmem:[%s5 + $0x50] sm:$0xf]
    %v260 = vld [vmem:[%s5 + $0x54] sm:$0xf]
    %v261 = vld [vmem:[%s5 + $0x58] sm:$0xf]
    %v262 = vld [vmem:[%s5 + $0x5c] sm:$0xf]
    %v263 = vld [vmem:[%s5 + $0x60] sm:$0xf]
    %v264 = vld [vmem:[%s5 + $0x64] sm:$0xf]
    %v265 = vld [vmem:[%s5 + $0x68] sm:$0xf]
    %v266 = vld [vmem:[%s5 + $0x6c] sm:$0xf]
    %v267 = vld [vmem:[%s5 + $0x70] sm:$0xf]
    %v268 = vld [vmem:[%s5 + $0x74] sm:$0xf]
    %v269 = vld [vmem:[%s5 + $0x78] sm:$0xf]
    %v270 = vld [vmem:[%s5 + $0x7c] sm:$0xf]
    %v271 = vld [vmem:[%s6] sm:$0x3]
    %v273 = vperm.slane %v271, 0
    %v274 = vperm.slane %v271, 1
    %v279 = vunpack.c.l.b16 %v237
    %v280 = vunpack.c.l.b16 %v238
    %v281 = vpack.c.b16 %v280, %v279
    %v314 = vunpack.c.l.b16 %v239
    %v315 = vunpack.c.l.b16 %v240
    %v316 = vunpack.c.l.b16 %v241
    %v317 = vunpack.c.l.b16 %v242
    %v318 = vunpack.c.l.b16 %v243
    %v319 = vunpack.c.l.b16 %v244
    %v320 = vunpack.c.l.b16 %v245
    %v321 = vunpack.c.l.b16 %v246
    %v322 = vunpack.c.l.b16 %v247
    %v323 = vunpack.c.l.b16 %v248
    %v324 = vunpack.c.l.b16 %v249
    %v325 = vunpack.c.l.b16 %v250
    %v326 = vunpack.c.l.b16 %v251
    %v327 = vunpack.c.l.b16 %v252
    %v328 = vunpack.c.l.b16 %v253
    %v329 = vunpack.c.l.b16 %v254
    %v330 = vunpack.c.l.b16 %v255
    %v331 = vunpack.c.l.b16 %v256
    %v332 = vunpack.c.l.b16 %v257
    %v333 = vunpack.c.l.b16 %v258
    %v334 = vunpack.c.l.b16 %v259
    %v335 = vunpack.c.l.b16 %v260
    %v336 = vunpack.c.l.b16 %v261
    %v337 = vunpack.c.l.b16 %v262
    %v338 = vunpack.c.l.b16 %v263
    %v339 = vunpack.c.l.b16 %v264
    %v340 = vunpack.c.l.b16 %v265
    %v341 = vunpack.c.l.b16 %v266
    %v342 = vunpack.c.l.b16 %v267
    %v343 = vunpack.c.l.b16 %v268
    %v344 = vunpack.c.l.b16 %v269
    %v345 = vunpack.c.l.b16 %v270
    %v346 = vpack.c.b16 %v315, %v314
    %v347 = vpack.c.b16 %v317, %v316
    %v348 = vpack.c.b16 %v319, %v318
    %v349 = vpack.c.b16 %v321, %v320
    %v350 = vpack.c.b16 %v323, %v322
    %v351 = vpack.c.b16 %v325, %v324
    %v352 = vpack.c.b16 %v327, %v326
    %v353 = vpack.c.b16 %v329, %v328
    %v354 = vpack.c.b16 %v331, %v330
    %v355 = vpack.c.b16 %v333, %v332
    %v356 = vpack.c.b16 %v335, %v334
    %v357 = vpack.c.b16 %v337, %v336
    %v358 = vpack.c.b16 %v339, %v338
    %v359 = vpack.c.b16 %v341, %v340
    %v360 = vpack.c.b16 %v343, %v342
    %v361 = vpack.c.b16 %v345, %v344
    %vm362 = vcmask 261120
    %v364 = vsel %vm362, %v281, 0
    %v367 = vsel %vm362, %v346, 0
    %v370 = vsel %vm362, %v347, 0
    %v373 = vsel %vm362, %v348, 0
    %v376 = vsel %vm362, %v349, 0
    %v379 = vsel %vm362, %v350, 0
    %v382 = vsel %vm362, %v351, 0
    %v385 = vsel %vm362, %v352, 0
    %v388 = vsel %vm362, %v353, 0
    %v391 = vsel %vm362, %v354, 0
    %v394 = vsel %vm362, %v355, 0
    %v397 = vsel %vm362, %v356, 0
    %v400 = vsel %vm362, %v357, 0
    %v403 = vsel %vm362, %v358, 0
    %v406 = vsel %vm362, %v359, 0
    %v409 = vsel %vm362, %v360, 0
    %v412 = vsel %vm362, %v361, 0
    %414 = vmatpush.bf16.xpose.msra.mxu0 %v388
    %415 = vmatpush.bf16.xpose.msra.mxu0 %v385
    %416 = vmatpush.bf16.xpose.msra.mxu0 %v382
    %417 = vmatpush.bf16.xpose.msra.mxu0 %v379
    %418 = vmatpush.bf16.xpose.msra.mxu0 %v376
    %419 = vmatpush.bf16.xpose.msra.mxu0 %v373
    %420 = vmatpush.bf16.xpose.msra.mxu0 %v370
    %421 = vmatpush.bf16.xpose.msra.mxu0 %v367
    %422 = vmatmul.bf16.gmra.mxu0 %v364
    %v423 = vpop.f32.mrf.mxu0
    %v424 = vadd.f32 %v273, %v423
    %v425 = vpop.f32.mrf.mxu0
    %v426 = vadd.f32 %v273, %v425
    %427 = vdwg.mxu0
    %428 = vmatpush.bf16.xpose.msra.mxu0 %v412
    %429 = vmatpush.bf16.xpose.msra.mxu0 %v409
    %430 = vmatpush.bf16.xpose.msra.mxu0 %v406
    %431 = vmatpush.bf16.xpose.msra.mxu0 %v403
    %432 = vmatpush.bf16.xpose.msra.mxu0 %v400
    %433 = vmatpush.bf16.xpose.msra.mxu0 %v397
    %434 = vmatpush.bf16.xpose.msra.mxu0 %v394
    %435 = vmatpush.bf16.xpose.msra.mxu0 %v391
    %436 = vmatmul.bf16.gmra.mxu0 %v364
    %v437 = vpop.f32.mrf.mxu0
    %v438 = vadd.f32 %v274, %v437
    %v439 = vpop.f32.mrf.mxu0
    %v440 = vadd.f32 %v274, %v439
    %441 = vdwg.mxu0
    %442 = vst [vmem:[#allocation3] sm:$0xff] %v424
    %443 = vst [vmem:[#allocation3 + $0x8] sm:$0xff] %v438
    %444 = vst [vmem:[#allocation3 + $0x10] sm:$0xff] %v426
    %445 = vst [vmem:[#allocation3 + $0x18] sm:$0xff] %v440
    // Predicated region
    $region34: #{tpu_custom_call.1} parent=1 // pred_check
      _
    $region35: #{tpu_custom_call.1} parent=1 // pred_check_branch
      %447 = sbr.rel (0) target = $region37
    $region36: #{tpu_custom_call.1} parent=1 // pred_region
      %449 = vsyncadd [#allocation4], 0
      %s450 = sshll.u32 [#allocation3], 4
      %s451 = int_to_ptr.vmem [resolvable:$true] %s450
      %s452 = sshll.u32 %s7, 4
      %s453 = int_to_ptr.hbm [resolvable:$true] %s452
      %458 = dma.vmem_to_hbm [thread:$0]  %s451, 512, %s453, [#allocation4], 256, 256, 16
    $region37: #{tpu_custom_call.1} parent=1 // pred_fallthru
      _
    // Predicated region
    $region38: #{tpu_custom_call.1} parent=1 // pred_check
      _
    $region39: #{tpu_custom_call.1} parent=1 // pred_check_branch
      %460 = sbr.rel (0) target = $region41
    $region40: #{tpu_custom_call.1} parent=1 // pred_region
      %462 = dma.done [#allocation4], 512
    $region41: #{tpu_custom_call.1} parent=1 // pred_fallthru
      _
    %463 = vsyncpa [#allocation4], 1

</llo_original>
